<compile_context>
chip_gen: v6e
topology: v6e:2x2x1
jax: 0.10.0
libtpu: 0.0.40
codegen_flags: <defaults>
</compile_context>

<pallas_src>
import math

import jax
import jax.numpy as jnp
from jax.experimental import pallas as pl
from jax.experimental.pallas import tpu as pltpu


_SMALL_FILL_BYTES = 1 << 20  # below this, plain XLA broadcast-fill wins.


def _fill_kernel(val_ref, o_ref):
    # val_ref: (1,) already-clamped inv_std scalar in SMEM (float32).
    # o_ref:   (block_rows, lane) output tile in VMEM.
    # Pure store: splat the scalar across the whole tile. No input DMA.
    o_ref[...] = jnp.full(o_ref.shape, val_ref[0], dtype=o_ref.dtype)


def _cdiv(a, b):
    return -(-a // b)


def _round_up(a, b):
    return _cdiv(a, b) * b


def _tpu_generation():
    """Best-effort TPU generation (5 / 6 / 7); None if unknown."""
    try:
        kind = jax.devices()[0].device_kind.lower()
    except Exception:
        return None
    if "v7" in kind or "7x" in kind:
        return 7
    if "v6" in kind or "6e" in kind or "6p" in kind:
        return 6
    if "v5" in kind or "5e" in kind or "5p" in kind:
        return 5
    return None


def _target_block_bytes(gen):
    # Sized so the ~0.35 us per-grid-step overhead stays well under 10% of a
    # block's HBM-writeback time on each generation.
    if gen == 7:
        return 14 << 20   # ~3.2 TB/s per TC
    if gen == 6:
        return 10 << 20   # ~1.4 TB/s
    if gen == 5:
        return 6 << 20    # ~0.8 TB/s
    return 8 << 20


def _choose_tiling(n, itemsize, target_bytes, want_multi_block):
    """Pick (lane, rows, block_rows) for a flat slab of n elements (n % 128 == 0)."""
    # Packed-sublane minimum rows: 8 for 32-bit, 16 for bf16, 32 for int8/fp8.
    pack = max(1, 4 // itemsize)
    min_rows = 8 * pack
    # Largest lane width that divides n exactly -> no padding, no slice pass.
    lane = 128
    for cand in (4096, 2048, 1024, 512, 256):
        if n % cand == 0:
            lane = cand
            break
    rows = n // lane  # exact
    row_bytes = lane * itemsize
    target_rows = max(min_rows, (target_bytes // row_bytes) // min_rows * min_rows)
    if rows > target_rows:
        block_rows = target_rows          # grid >= 2; ragged last block is masked by Pallas
    else:
        block_rows = rows                 # single full-extent block (always a legal block dim)
        if want_multi_block and rows >= 2 * min_rows:
            # v7x: keep >= 2 grid steps so the "parallel" axis spans both TensorCores.
            half = _round_up(_cdiv(rows, 2), min_rows)
            if half < rows:
                block_rows = half
    return lane, rows, block_rows


def _pallas_fill(n, dtype, val1):
    """Flat (n,) fill of `val1[0]` via Pallas; caller guarantees n % 128 == 0."""
    itemsize = jnp.dtype(dtype).itemsize
    gen = _tpu_generation()
    lane, rows, block_rows = _choose_tiling(
        n, itemsize, _target_block_bytes(gen), want_multi_block=(gen == 7))
    grid = (_cdiv(rows, block_rows),)
    chunk_bytes = block_rows * lane * itemsize
    # Double-buffered output blocks + headroom; capped at 48 MiB which is safe
    # on every generation (v7x physical VMEM is 64 MiB/TC, v5e/v6e have 128).
    vmem_limit = min(48 << 20, max(32 << 20, 2 * chunk_bytes + (4 << 20)))

    out2d = pl.pallas_call(
        _fill_kernel,
        out_shape=jax.ShapeDtypeStruct((rows, lane), dtype),
        grid=grid,
        in_specs=[
            pl.BlockSpec(memory_space=pltpu.SMEM),  # clamped scalar, untiled
        ],
        out_specs=pl.BlockSpec((block_rows, lane), lambda i: (i, 0)),
        compiler_params=pltpu.CompilerParams(
            dimension_semantics=("parallel",),  # lets v7x shard the grid over 2 TCs
            vmem_limit_bytes=vmem_limit,
        ),
        cost_estimate=pl.CostEstimate(
            flops=0, transcendentals=0, bytes_accessed=rows * lane * itemsize),
    )(val1)
    return jnp.reshape(out2d, (-1,))


def learned_variance_forward(x, inv_std_param):
    """Pallas implementation of LearnedVariance.forward.

    Args:
      x:             array of any shape (only shape/dtype are used).
      inv_std_param: scalar learned parameter `_inv_std` (array or Python float).
    Returns:
      Array of x's shape/dtype filled with clamp(exp(inv_std_param*10), 1e-6, 1e6).
      (Matches PyTorch promotion: a 0-dim f32 parameter does not promote a
      half/bf16 x, so the result keeps x's dtype; for float16 the 1e6 clamp
      saturates to +inf exactly like torch does.)
    """
    orig_shape = x.shape
    dtype = x.dtype
    n = math.prod(orig_shape) if len(orig_shape) > 0 else 1
    itemsize = jnp.dtype(dtype).itemsize

    # inv_std property + clamp, hoisted out of the kernel (scalar-only work).
    p = jnp.asarray(inv_std_param, dtype=jnp.float32)
    val = jnp.clip(jnp.exp(p * 10.0), 1e-6, 1e6)

    # Small-tensor fast path: dispatch + grid-step overhead dominates below
    # ~1 MiB, and XLA's broadcast fill is already HBM-write-bound.
    if n * itemsize < _SMALL_FILL_BYTES:
        return jnp.full(orig_shape, val, dtype=dtype)

    val1 = jnp.reshape(val, (1,))
    if n % 128 == 0:
        out_flat = _pallas_fill(n, dtype, val1)
    else:
        # Rare ragged case (n not a multiple of 128): pad to the next lane
        # multiple, then slice.  The slice costs one extra HBM pass; every
        # 128-aligned size avoids it entirely.
        n_pad = _round_up(n, 128)
        out_flat = _pallas_fill(n_pad, dtype, val1)[:n]
    return jnp.reshape(out_flat, orig_shape)


if __name__ == "__main__":
    key = jax.random.PRNGKey(0)

    # Deterministic "parameter" init (module __init__ takes init_val).
    init_val = 0.15
    inv_std_param = jnp.asarray(init_val, dtype=jnp.float32)
    ref_val = jnp.clip(jnp.exp(inv_std_param * 10.0), 1e-6, 1e6)

    test_shapes = [
        (2, 4, 16, 16),   # small demo shape            -> XLA fast path
        (4096, 128),      # renderer-like (rays, samples) slab -> Pallas path
        (1000, 300),      # ragged size (n % 128 != 0)  -> pad + slice fallback
    ]
    for shape in test_shapes:
        x = jax.random.normal(key, shape, dtype=jnp.float32)
        out = jax.block_until_ready(learned_variance_forward(x, inv_std_param))
        ref = jnp.ones_like(x) * ref_val
        assert out.shape == x.shape and out.dtype == x.dtype, shape
        assert jnp.allclose(out, ref, rtol=1e-6, atol=1e-6), shape

    print("KERNEL_OK")
</pallas_src>

<mosaic_0001>
module attributes {stable_mosaic.version = 11 : i64} {
  func.func @_fill_kernel(%arg0: i32, %arg1: memref<1xf32, #tpu.memory_space<smem>>, %arg2: memref<128x4096xf32, #tpu.memory_space<vmem>>) attributes {dimension_semantics = [#tpu.dimension_semantics<parallel>], iteration_bounds = array<i64: 1>, scalar_prefetch = 0 : i64, scratch_operands = 0 : i64, tpu.core_type = #tpu.core_type<tc>, window_params = [{transform_indices = @transform_0, window_bounds = array<i64: 1>}, {transform_indices = @transform_1, window_bounds = array<i64: 128, 4096>}]} {
    %c0 = arith.constant 0 : index
    %0 = memref.load %arg1[%c0] : memref<1xf32, #tpu.memory_space<smem>>
    %1 = vector.broadcast %0 : f32 to vector<128x4096xf32>
    %c0_0 = arith.constant 0 : index
    %c0_1 = arith.constant 0 : index
    %2 = vector.load %arg2[%c0_0, %c0_1] : memref<128x4096xf32, #tpu.memory_space<vmem>>, vector<128x4096xf32>
    tpu.vector_store %arg2[%c0_0, %c0_1], %1 {strides = array<i32>} : memref<128x4096xf32, #tpu.memory_space<vmem>>, vector<128x4096xf32>,
    return
  }
  func.func @transform_0(%arg0: i32) -> i32 {
    %c0_i32 = arith.constant 0 : i32
    %c0_i32_0 = arith.constant 0 : i32
    return %c0_i32 : i32
  }
  func.func @transform_1(%arg0: i32) -> (i32, i32) {
    %c0_i32 = arith.constant 0 : i32
    %c0_i32_0 = arith.constant 0 : i32
    return %arg0, %c0_i32 : i32, i32
  }
}

</mosaic_0001>

<llo_original>
// kernel: tpu_custom_call.1
$region0: #{tpu_custom_call.1}
  #allocation0 [shape = 'u32[]', space=smem, size = 0x4, offset = 0x4, fixed_abs, tag = 'smem constant byte address 0x4 - core index']
  #allocation1 [shape = 'u32[144,128]{1,0:T(1,128)}', space=vmem, size = 0x12000, scoped, tag = 'internal scratch']
  #allocation2 [shape = 'f32[1]{0:T(128)S(6)}', space=smem, size = 0x200, scoped, tag = 'scoped memory for tpu_custom_call.1']
  %s0 = inlined_call_operand.<no memory space> [shape: f32[1], index: 0, kind: input, shape index: {}]
  %s1 = inlined_call_operand.hbm [shape: f32[128,4096], index: 1, kind: output, shape index: {}]
  %s2 = sld [smem:[#allocation0]]
  $region14: #{tpu_custom_call.1} parent=0
    _
  %s4 = ssub.s32 1, %s2
  %s5 = scalar_select 0, %s4, %s2
  %6 = sst [smem:[#allocation2]] %s0
  $region1: #{tpu_custom_call.1} parent=0
    #allocation3 [shape = 'u8[2097152]{0}', space=vmem, size = 0x200000, scoped, tag = 'output window, operand 0, single buffered']
    #allocation4 [shape = 's32[1]{0}', space=sflag, size = 0x4, scoped, tag = 'scoped memory for tpu_custom_call.1']
    %7 = vsyncpa [#allocation4], 0
    // Predicated region
    $region2: #{tpu_custom_call.1} parent=1 // pred_check
      _
    $region3: #{tpu_custom_call.1} parent=1 // pred_check_branch
      %9 = sbr.rel (0) target = $region5
    $region4: #{tpu_custom_call.1} parent=1 // pred_region
      _
    $region5: #{tpu_custom_call.1} parent=1 // pred_fallthru
      _
    %s10 = sld [smem:[#allocation2]]
    %v11 = vstv %s10
    %12 = vst [vmem:[#allocation3] sm:$0xff] %v11
    %13 = vst [vmem:[#allocation3 + $0x8] sm:$0xff] %v11
    %14 = vst [vmem:[#allocation3 + $0x10] sm:$0xff] %v11
    %15 = vst [vmem:[#allocation3 + $0x18] sm:$0xff] %v11
    %16 = vst [vmem:[#allocation3 + $0x20] sm:$0xff] %v11
    %17 = vst [vmem:[#allocation3 + $0x28] sm:$0xff] %v11
    %18 = vst [vmem:[#allocation3 + $0x30] sm:$0xff] %v11
    %19 = vst [vmem:[#allocation3 + $0x38] sm:$0xff] %v11
    %20 = vst [vmem:[#allocation3 + $0x40] sm:$0xff] %v11
    %21 = vst [vmem:[#allocation3 + $0x48] sm:$0xff] %v11
    %22 = vst [vmem:[#allocation3 + $0x50] sm:$0xff] %v11
    %23 = vst [vmem:[#allocation3 + $0x58] sm:$0xff] %v11
    %24 = vst [vmem:[#allocation3 + $0x60] sm:$0xff] %v11
    %25 = vst [vmem:[#allocation3 + $0x68] sm:$0xff] %v11
    %26 = vst [vmem:[#allocation3 + $0x70] sm:$0xff] %v11
    %27 = vst [vmem:[#allocation3 + $0x78] sm:$0xff] %v11
    %28 = vst [vmem:[#allocation3 + $0x80] sm:$0xff] %v11
    %29 = vst [vmem:[#allocation3 + $0x88] sm:$0xff] %v11
    %30 = vst [vmem:[#allocation3 + $0x90] sm:$0xff] %v11
    %31 = vst [vmem:[#allocation3 + $0x98] sm:$0xff] %v11
    %32 = vst [vmem:[#allocation3 + $0xa0] sm:$0xff] %v11
    %33 = vst [vmem:[#allocation3 + $0xa8] sm:$0xff] %v11
    %34 = vst [vmem:[#allocation3 + $0xb0] sm:$0xff] %v11
    %35 = vst [vmem:[#allocation3 + $0xb8] sm:$0xff] %v11
    %36 = vst [vmem:[#allocation3 + $0xc0] sm:$0xff] %v11
    %37 = vst [vmem:[#allocation3 + $0xc8] sm:$0xff] %v11
    %38 = vst [vmem:[#allocation3 + $0xd0] sm:$0xff] %v11
    %39 = vst [vmem:[#allocation3 + $0xd8] sm:$0xff] %v11
    %40 = vst [vmem:[#allocation3 + $0xe0] sm:$0xff] %v11
    %41 = vst [vmem:[#allocation3 + $0xe8] sm:$0xff] %v11
    %42 = vst [vmem:[#allocation3 + $0xf0] sm:$0xff] %v11
    %43 = vst [vmem:[#allocation3 + $0xf8] sm:$0xff] %v11
    %44 = vst [vmem:[#allocation3 + $0x100] sm:$0xff] %v11
    %45 = vst [vmem:[#allocation3 + $0x108] sm:$0xff] %v11
    %46 = vst [vmem:[#allocation3 + $0x110] sm:$0xff] %v11
    %47 = vst [vmem:[#allocation3 + $0x118] sm:$0xff] %v11
    %48 = vst [vmem:[#allocation3 + $0x120] sm:$0xff] %v11
    %49 = vst [vmem:[#allocation3 + $0x128] sm:$0xff] %v11
    %50 = vst [vmem:[#allocation3 + $0x130] sm:$0xff] %v11
    %51 = vst [vmem:[#allocation3 + $0x138] sm:$0xff] %v11
    %52 = vst [vmem:[#allocation3 + $0x140] sm:$0xff] %v11
    %53 = vst [vmem:[#allocation3 + $0x148] sm:$0xff] %v11
    %54 = vst [vmem:[#allocation3 + $0x150] sm:$0xff] %v11
    %55 = vst [vmem:[#allocation3 + $0x158] sm:$0xff] %v11
    %56 = vst [vmem:[#allocation3 + $0x160] sm:$0xff] %v11
    %57 = vst [vmem:[#allocation3 + $0x168] sm:$0xff] %v11
    %58 = vst [vmem:[#allocation3 + $0x170] sm:$0xff] %v11
    %59 = vst [vmem:[#allocation3 + $0x178] sm:$0xff] %v11
    %60 = vst [vmem:[#allocation3 + $0x180] sm:$0xff] %v11
    %61 = vst [vmem:[#allocation3 + $0x188] sm:$0xff] %v11
    %62 = vst [vmem:[#allocation3 + $0x190] sm:$0xff] %v11
    %63 = vst [vmem:[#allocation3 + $0x198] sm:$0xff] %v11
    %64 = vst [vmem:[#allocation3 + $0x1a0] sm:$0xff] %v11
    %65 = vst [vmem:[#allocation3 + $0x1a8] sm:$0xff] %v11
    %66 = vst [vmem:[#allocation3 + $0x1b0] sm:$0xff] %v11
    %67 = vst [vmem:[#allocation3 + $0x1b8] sm:$0xff] %v11
    %68 = vst [vmem:[#allocation3 + $0x1c0] sm:$0xff] %v11
    %69 = vst [vmem:[#allocation3 + $0x1c8] sm:$0xff] %v11
    %70 = vst [vmem:[#allocation3 + $0x1d0] sm:$0xff] %v11
    %71 = vst [vmem:[#allocation3 + $0x1d8] sm:$0xff] %v11
    %72 = vst [vmem:[#allocation3 + $0x1e0] sm:$0xff] %v11
    %73 = vst [vmem:[#allocation3 + $0x1e8] sm:$0xff] %v11
    %74 = vst [vmem:[#allocation3 + $0x1f0] sm:$0xff] %v11
    %75 = vst [vmem:[#allocation3 + $0x1f8] sm:$0xff] %v11
    %76 = vst [vmem:[#allocation3 + $0x200] sm:$0xff] %v11
    %77 = vst [vmem:[#allocation3 + $0x208] sm:$0xff] %v11
    %78 = vst [vmem:[#allocation3 + $0x210] sm:$0xff] %v11
    %79 = vst [vmem:[#allocation3 + $0x218] sm:$0xff] %v11
    %80 = vst [vmem:[#allocation3 + $0x220] sm:$0xff] %v11
    %81 = vst [vmem:[#allocation3 + $0x228] sm:$0xff] %v11
    %82 = vst [vmem:[#allocation3 + $0x230] sm:$0xff] %v11
    %83 = vst [vmem:[#allocation3 + $0x238] sm:$0xff] %v11
    %84 = vst [vmem:[#allocation3 + $0x240] sm:$0xff] %v11
    %85 = vst [vmem:[#allocation3 + $0x248] sm:$0xff] %v11
    %86 = vst [vmem:[#allocation3 + $0x250] sm:$0xff] %v11
    %87 = vst [vmem:[#allocation3 + $0x258] sm:$0xff] %v11
    %88 = vst [vmem:[#allocation3 + $0x260] sm:$0xff] %v11
    %89 = vst [vmem:[#allocation3 + $0x268] sm:$0xff] %v11
    %90 = vst [vmem:[#allocation3 + $0x270] sm:$0xff] %v11
    %91 = vst [vmem:[#allocation3 + $0x278] sm:$0xff] %v11
    %92 = vst [vmem:[#allocation3 + $0x280] sm:$0xff] %v11
    %93 = vst [vmem:[#allocation3 + $0x288] sm:$0xff] %v11
    %94 = vst [vmem:[#allocation3 + $0x290] sm:$0xff] %v11
    %95 = vst [vmem:[#allocation3 + $0x298] sm:$0xff] %v11
    %96 = vst [vmem:[#allocation3 + $0x2a0] sm:$0xff] %v11
    %97 = vst [vmem:[#allocation3 + $0x2a8] sm:$0xff] %v11
    %98 = vst [vmem:[#allocation3 + $0x2b0] sm:$0xff] %v11
    %99 = vst [vmem:[#allocation3 + $0x2b8] sm:$0xff] %v11
    %100 = vst [vmem:[#allocation3 + $0x2c0] sm:$0xff] %v11
    %101 = vst [vmem:[#allocation3 + $0x2c8] sm:$0xff] %v11
    %102 = vst [vmem:[#allocation3 + $0x2d0] sm:$0xff] %v11
    %103 = vst [vmem:[#allocation3 + $0x2d8] sm:$0xff] %v11
    %104 = vst [vmem:[#allocation3 + $0x2e0] sm:$0xff] %v11
    %105 = vst [vmem:[#allocation3 + $0x2e8] sm:$0xff] %v11
    %106 = vst [vmem:[#allocation3 + $0x2f0] sm:$0xff] %v11
    %107 = vst [vmem:[#allocation3 + $0x2f8] sm:$0xff] %v11
    %108 = vst [vmem:[#allocation3 + $0x300] sm:$0xff] %v11
    %109 = vst [vmem:[#allocation3 + $0x308] sm:$0xff] %v11
    %110 = vst [vmem:[#allocation3 + $0x310] sm:$0xff] %v11
    %111 = vst [vmem:[#allocation3 + $0x318] sm:$0xff] %v11
    %112 = vst [vmem:[#allocation3 + $0x320] sm:$0xff] %v11
    %113 = vst [vmem:[#allocation3 + $0x328] sm:$0xff] %v11
    %114 = vst [vmem:[#allocation3 + $0x330] sm:$0xff] %v11
    %115 = vst [vmem:[#allocation3 + $0x338] sm:$0xff] %v11
    %116 = vst [vmem:[#allocation3 + $0x340] sm:$0xff] %v11
    %117 = vst [vmem:[#allocation3 + $0x348] sm:$0xff] %v11
    %118 = vst [vmem:[#allocation3 + $0x350] sm:$0xff] %v11
    %119 = vst [vmem:[#allocation3 + $0x358] sm:$0xff] %v11
    %120 = vst [vmem:[#allocation3 + $0x360] sm:$0xff] %v11
    %121 = vst [vmem:[#allocation3 + $0x368] sm:$0xff] %v11
    %122 = vst [vmem:[#allocation3 + $0x370] sm:$0xff] %v11
    %123 = vst [vmem:[#allocation3 + $0x378] sm:$0xff] %v11
    %124 = vst [vmem:[#allocation3 + $0x380] sm:$0xff] %v11
    %125 = vst [vmem:[#allocation3 + $0x388] sm:$0xff] %v11
    %126 = vst [vmem:[#allocation3 + $0x390] sm:$0xff] %v11
    %127 = vst [vmem:[#allocation3 + $0x398] sm:$0xff] %v11
    %128 = vst [vmem:[#allocation3 + $0x3a0] sm:$0xff] %v11
    %129 = vst [vmem:[#allocation3 + $0x3a8] sm:$0xff] %v11
    %130 = vst [vmem:[#allocation3 + $0x3b0] sm:$0xff] %v11
    %131 = vst [vmem:[#allocation3 + $0x3b8] sm:$0xff] %v11
    %132 = vst [vmem:[#allocation3 + $0x3c0] sm:$0xff] %v11
    %133 = vst [vmem:[#allocation3 + $0x3c8] sm:$0xff] %v11
    %134 = vst [vmem:[#allocation3 + $0x3d0] sm:$0xff] %v11
    %135 = vst [vmem:[#allocation3 + $0x3d8] sm:$0xff] %v11
    %136 = vst [vmem:[#allocation3 + $0x3e0] sm:$0xff] %v11
    %137 = vst [vmem:[#allocation3 + $0x3e8] sm:$0xff] %v11
    %138 = vst [vmem:[#allocation3 + $0x3f0] sm:$0xff] %v11
    %139 = vst [vmem:[#allocation3 + $0x3f8] sm:$0xff] %v11
    %140 = vst [vmem:[#allocation3 + $0x400] sm:$0xff] %v11
    %141 = vst [vmem:[#allocation3 + $0x408] sm:$0xff] %v11
    %142 = vst [vmem:[#allocation3 + $0x410] sm:$0xff] %v11
    %143 = vst [vmem:[#allocation3 + $0x418] sm:$0xff] %v11
    %144 = vst [vmem:[#allocation3 + $0x420] sm:$0xff] %v11
    %145 = vst [vmem:[#allocation3 + $0x428] sm:$0xff] %v11
    %146 = vst [vmem:[#allocation3 + $0x430] sm:$0xff] %v11
    %147 = vst [vmem:[#allocation3 + $0x438] sm:$0xff] %v11
    %148 = vst [vmem:[#allocation3 + $0x440] sm:$0xff] %v11
    %149 = vst [vmem:[#allocation3 + $0x448] sm:$0xff] %v11
    %150 = vst [vmem:[#allocation3 + $0x450] sm:$0xff] %v11
    %151 = vst [vmem:[#allocation3 + $0x458] sm:$0xff] %v11
    %152 = vst [vmem:[#allocation3 + $0x460] sm:$0xff] %v11
    %153 = vst [vmem:[#allocation3 + $0x468] sm:$0xff] %v11
    %154 = vst [vmem:[#allocation3 + $0x470] sm:$0xff] %v11
    %155 = vst [vmem:[#allocation3 + $0x478] sm:$0xff] %v11
    %156 = vst [vmem:[#allocation3 + $0x480] sm:$0xff] %v11
    %157 = vst [vmem:[#allocation3 + $0x488] sm:$0xff] %v11
    %158 = vst [vmem:[#allocation3 + $0x490] sm:$0xff] %v11
    %159 = vst [vmem:[#allocation3 + $0x498] sm:$0xff] %v11
    %160 = vst [vmem:[#allocation3 + $0x4a0] sm:$0xff] %v11
    %161 = vst [vmem:[#allocation3 + $0x4a8] sm:$0xff] %v11
    %162 = vst [vmem:[#allocation3 + $0x4b0] sm:$0xff] %v11
    %163 = vst [vmem:[#allocation3 + $0x4b8] sm:$0xff] %v11
    %164 = vst [vmem:[#allocation3 + $0x4c0] sm:$0xff] %v11
    %165 = vst [vmem:[#allocation3 + $0x4c8] sm:$0xff] %v11
    %166 = vst [vmem:[#allocation3 + $0x4d0] sm:$0xff] %v11
    %167 = vst [vmem:[#allocation3 + $0x4d8] sm:$0xff] %v11
    %168 = vst [vmem:[#allocation3 + $0x4e0] sm:$0xff] %v11
    %169 = vst [vmem:[#allocation3 + $0x4e8] sm:$0xff] %v11
    %170 = vst [vmem:[#allocation3 + $0x4f0] sm:$0xff] %v11
    %171 = vst [vmem:[#allocation3 + $0x4f8] sm:$0xff] %v11
    %172 = vst [vmem:[#allocation3 + $0x500] sm:$0xff] %v11
    %173 = vst [vmem:[#allocation3 + $0x508] sm:$0xff] %v11
    %174 = vst [vmem:[#allocation3 + $0x510] sm:$0xff] %v11
    %175 = vst [vmem:[#allocation3 + $0x518] sm:$0xff] %v11
    %176 = vst [vmem:[#allocation3 + $0x520] sm:$0xff] %v11
    %177 = vst [vmem:[#allocation3 + $0x528] sm:$0xff] %v11
    %178 = vst [vmem:[#allocation3 + $0x530] sm:$0xff] %v11
    %179 = vst [vmem:[#allocation3 + $0x538] sm:$0xff] %v11
    %180 = vst [vmem:[#allocation3 + $0x540] sm:$0xff] %v11
    %181 = vst [vmem:[#allocation3 + $0x548] sm:$0xff] %v11
    %182 = vst [vmem:[#allocation3 + $0x550] sm:$0xff] %v11
    %183 = vst [vmem:[#allocation3 + $0x558] sm:$0xff] %v11
    %184 = vst [vmem:[#allocation3 + $0x560] sm:$0xff] %v11
    %185 = vst [vmem:[#allocation3 + $0x568] sm:$0xff] %v11
    %186 = vst [vmem:[#allocation3 + $0x570] sm:$0xff] %v11
    %187 = vst [vmem:[#allocation3 + $0x578] sm:$0xff] %v11
    %188 = vst [vmem:[#allocation3 + $0x580] sm:$0xff] %v11
    %189 = vst [vmem:[#allocation3 + $0x588] sm:$0xff] %v11
    %190 = vst [vmem:[#allocation3 + $0x590] sm:$0xff] %v11
    %191 = vst [vmem:[#allocation3 + $0x598] sm:$0xff] %v11
    %192 = vst [vmem:[#allocation3 + $0x5a0] sm:$0xff] %v11
    %193 = vst [vmem:[#allocation3 + $0x5a8] sm:$0xff] %v11
    %194 = vst [vmem:[#allocation3 + $0x5b0] sm:$0xff] %v11
    %195 = vst [vmem:[#allocation3 + $0x5b8] sm:$0xff] %v11
    %196 = vst [vmem:[#allocation3 + $0x5c0] sm:$0xff] %v11
    %197 = vst [vmem:[#allocation3 + $0x5c8] sm:$0xff] %v11
    %198 = vst [vmem:[#allocation3 + $0x5d0] sm:$0xff] %v11
    %199 = vst [vmem:[#allocation3 + $0x5d8] sm:$0xff] %v11
    %200 = vst [vmem:[#allocation3 + $0x5e0] sm:$0xff] %v11
    %201 = vst [vmem:[#allocation3 + $0x5e8] sm:$0xff] %v11
    %202 = vst [vmem:[#allocation3 + $0x5f0] sm:$0xff] %v11
    %203 = vst [vmem:[#allocation3 + $0x5f8] sm:$0xff] %v11
    %204 = vst [vmem:[#allocation3 + $0x600] sm:$0xff] %v11
    %205 = vst [vmem:[#allocation3 + $0x608] sm:$0xff] %v11
    %206 = vst [vmem:[#allocation3 + $0x610] sm:$0xff] %v11
    %207 = vst [vmem:[#allocation3 + $0x618] sm:$0xff] %v11
    %208 = vst [vmem:[#allocation3 + $0x620] sm:$0xff] %v11
    %209 = vst [vmem:[#allocation3 + $0x628] sm:$0xff] %v11
    %210 = vst [vmem:[#allocation3 + $0x630] sm:$0xff] %v11
    %211 = vst [vmem:[#allocation3 + $0x638] sm:$0xff] %v11
    %212 = vst [vmem:[#allocation3 + $0x640] sm:$0xff] %v11
    %213 = vst [vmem:[#allocation3 + $0x648] sm:$0xff] %v11
    %214 = vst [vmem:[#allocation3 + $0x650] sm:$0xff] %v11
    %215 = vst [vmem:[#allocation3 + $0x658] sm:$0xff] %v11
    %216 = vst [vmem:[#allocation3 + $0x660] sm:$0xff] %v11
    %217 = vst [vmem:[#allocation3 + $0x668] sm:$0xff] %v11
    %218 = vst [vmem:[#allocation3 + $0x670] sm:$0xff] %v11
    %219 = vst [vmem:[#allocation3 + $0x678] sm:$0xff] %v11
    %220 = vst [vmem:[#allocation3 + $0x680] sm:$0xff] %v11
    %221 = vst [vmem:[#allocation3 + $0x688] sm:$0xff] %v11
    %222 = vst [vmem:[#allocation3 + $0x690] sm:$0xff] %v11
    %223 = vst [vmem:[#allocation3 + $0x698] sm:$0xff] %v11
    %224 = vst [vmem:[#allocation3 + $0x6a0] sm:$0xff] %v11
    %225 = vst [vmem:[#allocation3 + $0x6a8] sm:$0xff] %v11
    %226 = vst [vmem:[#allocation3 + $0x6b0] sm:$0xff] %v11
    %227 = vst [vmem:[#allocation3 + $0x6b8] sm:$0xff] %v11
    %228 = vst [vmem:[#allocation3 + $0x6c0] sm:$0xff] %v11
    %229 = vst [vmem:[#allocation3 + $0x6c8] sm:$0xff] %v11
    %230 = vst [vmem:[#allocation3 + $0x6d0] sm:$0xff] %v11
    %231 = vst [vmem:[#allocation3 + $0x6d8] sm:$0xff] %v11
    %232 = vst [vmem:[#allocation3 + $0x6e0] sm:$0xff] %v11
    %233 = vst [vmem:[#allocation3 + $0x6e8] sm:$0xff] %v11
    %234 = vst [vmem:[#allocation3 + $0x6f0] sm:$0xff] %v11
    %235 = vst [vmem:[#allocation3 + $0x6f8] sm:$0xff] %v11
    %236 = vst [vmem:[#allocation3 + $0x700] sm:$0xff] %v11
    %237 = vst [vmem:[#allocation3 + $0x708] sm:$0xff] %v11
    %238 = vst [vmem:[#allocation3 + $0x710] sm:$0xff] %v11
    %239 = vst [vmem:[#allocation3 + $0x718] sm:$0xff] %v11
    %240 = vst [vmem:[#allocation3 + $0x720] sm:$0xff] %v11
    %241 = vst [vmem:[#allocation3 + $0x728] sm:$0xff] %v11
    %242 = vst [vmem:[#allocation3 + $0x730] sm:$0xff] %v11
    %243 = vst [vmem:[#allocation3 + $0x738] sm:$0xff] %v11
    %244 = vst [vmem:[#allocation3 + $0x740] sm:$0xff] %v11
    %245 = vst [vmem:[#allocation3 + $0x748] sm:$0xff] %v11
    %246 = vst [vmem:[#allocation3 + $0x750] sm:$0xff] %v11
    %247 = vst [vmem:[#allocation3 + $0x758] sm:$0xff] %v11
    %248 = vst [vmem:[#allocation3 + $0x760] sm:$0xff] %v11
    %249 = vst [vmem:[#allocation3 + $0x768] sm:$0xff] %v11
    %250 = vst [vmem:[#allocation3 + $0x770] sm:$0xff] %v11
    %251 = vst [vmem:[#allocation3 + $0x778] sm:$0xff] %v11
    %252 = vst [vmem:[#allocation3 + $0x780] sm:$0xff] %v11
    %253 = vst [vmem:[#allocation3 + $0x788] sm:$0xff] %v11
    %254 = vst [vmem:[#allocation3 + $0x790] sm:$0xff] %v11
    %255 = vst [vmem:[#allocation3 + $0x798] sm:$0xff] %v11
    %256 = vst [vmem:[#allocation3 + $0x7a0] sm:$0xff] %v11
    %257 = vst [vmem:[#allocation3 + $0x7a8] sm:$0xff] %v11
    %258 = vst [vmem:[#allocation3 + $0x7b0] sm:$0xff] %v11
    %259 = vst [vmem:[#allocation3 + $0x7b8] sm:$0xff] %v11
    %260 = vst [vmem:[#allocation3 + $0x7c0] sm:$0xff] %v11
    %261 = vst [vmem:[#allocation3 + $0x7c8] sm:$0xff] %v11
    %262 = vst [vmem:[#allocation3 + $0x7d0] sm:$0xff] %v11
    %263 = vst [vmem:[#allocation3 + $0x7d8] sm:$0xff] %v11
    %264 = vst [vmem:[#allocation3 + $0x7e0] sm:$0xff] %v11
    %265 = vst [vmem:[#allocation3 + $0x7e8] sm:$0xff] %v11
    %266 = vst [vmem:[#allocation3 + $0x7f0] sm:$0xff] %v11
    %267 = vst [vmem:[#allocation3 + $0x7f8] sm:$0xff] %v11
    %268 = vst [vmem:[#allocation3 + $0x800] sm:$0xff] %v11
    %269 = vst [vmem:[#allocation3 + $0x808] sm:$0xff] %v11
    %270 = vst [vmem:[#allocation3 + $0x810] sm:$0xff] %v11
    %271 = vst [vmem:[#allocation3 + $0x818] sm:$0xff] %v11
    %272 = vst [vmem:[#allocation3 + $0x820] sm:$0xff] %v11
    %273 = vst [vmem:[#allocation3 + $0x828] sm:$0xff] %v11
    %274 = vst [vmem:[#allocation3 + $0x830] sm:$0xff] %v11
    %275 = vst [vmem:[#allocation3 + $0x838] sm:$0xff] %v11
    %276 = vst [vmem:[#allocation3 + $0x840] sm:$0xff] %v11
    %277 = vst [vmem:[#allocation3 + $0x848] sm:$0xff] %v11
    %278 = vst [vmem:[#allocation3 + $0x850] sm:$0xff] %v11
    %279 = vst [vmem:[#allocation3 + $0x858] sm:$0xff] %v11
    %280 = vst [vmem:[#allocation3 + $0x860] sm:$0xff] %v11
    %281 = vst [vmem:[#allocation3 + $0x868] sm:$0xff] %v11
    %282 = vst [vmem:[#allocation3 + $0x870] sm:$0xff] %v11
    %283 = vst [vmem:[#allocation3 + $0x878] sm:$0xff] %v11
    %284 = vst [vmem:[#allocation3 + $0x880] sm:$0xff] %v11
    %285 = vst [vmem:[#allocation3 + $0x888] sm:$0xff] %v11
    %286 = vst [vmem:[#allocation3 + $0x890] sm:$0xff] %v11
    %287 = vst [vmem:[#allocation3 + $0x898] sm:$0xff] %v11
    %288 = vst [vmem:[#allocation3 + $0x8a0] sm:$0xff] %v11
    %289 = vst [vmem:[#allocation3 + $0x8a8] sm:$0xff] %v11
    %290 = vst [vmem:[#allocation3 + $0x8b0] sm:$0xff] %v11
    %291 = vst [vmem:[#allocation3 + $0x8b8] sm:$0xff] %v11
    %292 = vst [vmem:[#allocation3 + $0x8c0] sm:$0xff] %v11
    %293 = vst [vmem:[#allocation3 + $0x8c8] sm:$0xff] %v11
    %294 = vst [vmem:[#allocation3 + $0x8d0] sm:$0xff] %v11
    %295 = vst [vmem:[#allocation3 + $0x8d8] sm:$0xff] %v11
    %296 = vst [vmem:[#allocation3 + $0x8e0] sm:$0xff] %v11
    %297 = vst [vmem:[#allocation3 + $0x8e8] sm:$0xff] %v11
    %298 = vst [vmem:[#allocation3 + $0x8f0] sm:$0xff] %v11
    %299 = vst [vmem:[#allocation3 + $0x8f8] sm:$0xff] %v11
    %300 = vst [vmem:[#allocation3 + $0x900] sm:$0xff] %v11
    %301 = vst [vmem:[#allocation3 + $0x908] sm:$0xff] %v11
    %302 = vst [vmem:[#allocation3 + $0x910] sm:$0xff] %v11
    %303 = vst [vmem:[#allocation3 + $0x918] sm:$0xff] %v11
    %304 = vst [vmem:[#allocation3 + $0x920] sm:$0xff] %v11
    %305 = vst [vmem:[#allocation3 + $0x928] sm:$0xff] %v11
    %306 = vst [vmem:[#allocation3 + $0x930] sm:$0xff] %v11
    %307 = vst [vmem:[#allocation3 + $0x938] sm:$0xff] %v11
    %308 = vst [vmem:[#allocation3 + $0x940] sm:$0xff] %v11
    %309 = vst [vmem:[#allocation3 + $0x948] sm:$0xff] %v11
    %310 = vst [vmem:[#allocation3 + $0x950] sm:$0xff] %v11
    %311 = vst [vmem:[#allocation3 + $0x958] sm:$0xff] %v11
    %312 = vst [vmem:[#allocation3 + $0x960] sm:$0xff] %v11
    %313 = vst [vmem:[#allocation3 + $0x968] sm:$0xff] %v11
    %314 = vst [vmem:[#allocation3 + $0x970] sm:$0xff] %v11
    %315 = vst [vmem:[#allocation3 + $0x978] sm:$0xff] %v11
    %316 = vst [vmem:[#allocation3 + $0x980] sm:$0xff] %v11
    %317 = vst [vmem:[#allocation3 + $0x988] sm:$0xff] %v11
    %318 = vst [vmem:[#allocation3 + $0x990] sm:$0xff] %v11
    %319 = vst [vmem:[#allocation3 + $0x998] sm:$0xff] %v11
    %320 = vst [vmem:[#allocation3 + $0x9a0] sm:$0xff] %v11
    %321 = vst [vmem:[#allocation3 + $0x9a8] sm:$0xff] %v11
    %322 = vst [vmem:[#allocation3 + $0x9b0] sm:$0xff] %v11
    %323 = vst [vmem:[#allocation3 + $0x9b8] sm:$0xff] %v11
    %324 = vst [vmem:[#allocation3 + $0x9c0] sm:$0xff] %v11
    %325 = vst [vmem:[#allocation3 + $0x9c8] sm:$0xff] %v11
    %326 = vst [vmem:[#allocation3 + $0x9d0] sm:$0xff] %v11
    %327 = vst [vmem:[#allocation3 + $0x9d8] sm:$0xff] %v11
    %328 = vst [vmem:[#allocation3 + $0x9e0] sm:$0xff] %v11
    %329 = vst [vmem:[#allocation3 + $0x9e8] sm:$0xff] %v11
    %330 = vst [vmem:[#allocation3 + $0x9f0] sm:$0xff] %v11
    %331 = vst [vmem:[#allocation3 + $0x9f8] sm:$0xff] %v11
    %332 = vst [vmem:[#allocation3 + $0xa00] sm:$0xff] %v11
    %333 = vst [vmem:[#allocation3 + $0xa08] sm:$0xff] %v11
    %334 = vst [vmem:[#allocation3 + $0xa10] sm:$0xff] %v11
    %335 = vst [vmem:[#allocation3 + $0xa18] sm:$0xff] %v11
    %336 = vst [vmem:[#allocation3 + $0xa20] sm:$0xff] %v11
    %337 = vst [vmem:[#allocation3 + $0xa28] sm:$0xff] %v11
    %338 = vst [vmem:[#allocation3 + $0xa30] sm:$0xff] %v11
    %339 = vst [vmem:[#allocation3 + $0xa38] sm:$0xff] %v11
    %340 = vst [vmem:[#allocation3 + $0xa40] sm:$0xff] %v11
    %341 = vst [vmem:[#allocation3 + $0xa48] sm:$0xff] %v11
    %342 = vst [vmem:[#allocation3 + $0xa50] sm:$0xff] %v11
    %343 = vst [vmem:[#allocation3 + $0xa58] sm:$0xff] %v11
    %344 = vst [vmem:[#allocation3 + $0xa60] sm:$0xff] %v11
    %345 = vst [vmem:[#allocation3 + $0xa68] sm:$0xff] %v11
    %346 = vst [vmem:[#allocation3 + $0xa70] sm:$0xff] %v11
    %347 = vst [vmem:[#allocation3 + $0xa78] sm:$0xff] %v11
    %348 = vst [vmem:[#allocation3 + $0xa80] sm:$0xff] %v11
    %349 = vst [vmem:[#allocation3 + $0xa88] sm:$0xff] %v11
    %350 = vst [vmem:[#allocation3 + $0xa90] sm:$0xff] %v11
    %351 = vst [vmem:[#allocation3 + $0xa98] sm:$0xff] %v11
    %352 = vst [vmem:[#allocation3 + $0xaa0] sm:$0xff] %v11
    %353 = vst [vmem:[#allocation3 + $0xaa8] sm:$0xff] %v11
    %354 = vst [vmem:[#allocation3 + $0xab0] sm:$0xff] %v11
    %355 = vst [vmem:[#allocation3 + $0xab8] sm:$0xff] %v11
    %356 = vst [vmem:[#allocation3 + $0xac0] sm:$0xff] %v11
    %357 = vst [vmem:[#allocation3 + $0xac8] sm:$0xff] %v11
    %358 = vst [vmem:[#allocation3 + $0xad0] sm:$0xff] %v11
    %359 = vst [vmem:[#allocation3 + $0xad8] sm:$0xff] %v11
    %360 = vst [vmem:[#allocation3 + $0xae0] sm:$0xff] %v11
    %361 = vst [vmem:[#allocation3 + $0xae8] sm:$0xff] %v11
    %362 = vst [vmem:[#allocation3 + $0xaf0] sm:$0xff] %v11
    %363 = vst [vmem:[#allocation3 + $0xaf8] sm:$0xff] %v11
    %364 = vst [vmem:[#allocation3 + $0xb00] sm:$0xff] %v11
    %365 = vst [vmem:[#allocation3 + $0xb08] sm:$0xff] %v11
    %366 = vst [vmem:[#allocation3 + $0xb10] sm:$0xff] %v11
    %367 = vst [vmem:[#allocation3 + $0xb18] sm:$0xff] %v11
    %368 = vst [vmem:[#allocation3 + $0xb20] sm:$0xff] %v11
    %369 = vst [vmem:[#allocation3 + $0xb28] sm:$0xff] %v11
    %370 = vst [vmem:[#allocation3 + $0xb30] sm:$0xff] %v11
    %371 = vst [vmem:[#allocation3 + $0xb38] sm:$0xff] %v11
    %372 = vst [vmem:[#allocation3 + $0xb40] sm:$0xff] %v11
    %373 = vst [vmem:[#allocation3 + $0xb48] sm:$0xff] %v11
    %374 = vst [vmem:[#allocation3 + $0xb50] sm:$0xff] %v11
    %375 = vst [vmem:[#allocation3 + $0xb58] sm:$0xff] %v11
    %376 = vst [vmem:[#allocation3 + $0xb60] sm:$0xff] %v11
    %377 = vst [vmem:[#allocation3 + $0xb68] sm:$0xff] %v11
    %378 = vst [vmem:[#allocation3 + $0xb70] sm:$0xff] %v11
    %379 = vst [vmem:[#allocation3 + $0xb78] sm:$0xff] %v11
    %380 = vst [vmem:[#allocation3 + $0xb80] sm:$0xff] %v11
    %381 = vst [vmem:[#allocation3 + $0xb88] sm:$0xff] %v11
    %382 = vst [vmem:[#allocation3 + $0xb90] sm:$0xff] %v11
    %383 = vst [vmem:[#allocation3 + $0xb98] sm:$0xff] %v11
    %384 = vst [vmem:[#allocation3 + $0xba0] sm:$0xff] %v11
    %385 = vst [vmem:[#allocation3 + $0xba8] sm:$0xff] %v11
    %386 = vst [vmem:[#allocation3 + $0xbb0] sm:$0xff] %v11
    %387 = vst [vmem:[#allocation3 + $0xbb8] sm:$0xff] %v11
    %388 = vst [vmem:[#allocation3 + $0xbc0] sm:$0xff] %v11
    %389 = vst [vmem:[#allocation3 + $0xbc8] sm:$0xff] %v11
    %390 = vst [vmem:[#allocation3 + $0xbd0] sm:$0xff] %v11
    %391 = vst [vmem:[#allocation3 + $0xbd8] sm:$0xff] %v11
    %392 = vst [vmem:[#allocation3 + $0xbe0] sm:$0xff] %v11
    %393 = vst [vmem:[#allocation3 + $0xbe8] sm:$0xff] %v11
    %394 = vst [vmem:[#allocation3 + $0xbf0] sm:$0xff] %v11
    %395 = vst [vmem:[#allocation3 + $0xbf8] sm:$0xff] %v11
    %396 = vst [vmem:[#allocation3 + $0xc00] sm:$0xff] %v11
    %397 = vst [vmem:[#allocation3 + $0xc08] sm:$0xff] %v11
    %398 = vst [vmem:[#allocation3 + $0xc10] sm:$0xff] %v11
    %399 = vst [vmem:[#allocation3 + $0xc18] sm:$0xff] %v11
    %400 = vst [vmem:[#allocation3 + $0xc20] sm:$0xff] %v11
    %401 = vst [vmem:[#allocation3 + $0xc28] sm:$0xff] %v11
    %402 = vst [vmem:[#allocation3 + $0xc30] sm:$0xff] %v11
    %403 = vst [vmem:[#allocation3 + $0xc38] sm:$0xff] %v11
    %404 = vst [vmem:[#allocation3 + $0xc40] sm:$0xff] %v11
    %405 = vst [vmem:[#allocation3 + $0xc48] sm:$0xff] %v11
    %406 = vst [vmem:[#allocation3 + $0xc50] sm:$0xff] %v11
    %407 = vst [vmem:[#allocation3 + $0xc58] sm:$0xff] %v11
    %408 = vst [vmem:[#allocation3 + $0xc60] sm:$0xff] %v11
    %409 = vst [vmem:[#allocation3 + $0xc68] sm:$0xff] %v11
    %410 = vst [vmem:[#allocation3 + $0xc70] sm:$0xff] %v11
    %411 = vst [vmem:[#allocation3 + $0xc78] sm:$0xff] %v11
    %412 = vst [vmem:[#allocation3 + $0xc80] sm:$0xff] %v11
    %413 = vst [vmem:[#allocation3 + $0xc88] sm:$0xff] %v11
    %414 = vst [vmem:[#allocation3 + $0xc90] sm:$0xff] %v11
    %415 = vst [vmem:[#allocation3 + $0xc98] sm:$0xff] %v11
    %416 = vst [vmem:[#allocation3 + $0xca0] sm:$0xff] %v11
    %417 = vst [vmem:[#allocation3 + $0xca8] sm:$0xff] %v11
    %418 = vst [vmem:[#allocation3 + $0xcb0] sm:$0xff] %v11
    %419 = vst [vmem:[#allocation3 + $0xcb8] sm:$0xff] %v11
    %420 = vst [vmem:[#allocation3 + $0xcc0] sm:$0xff] %v11
    %421 = vst [vmem:[#allocation3 + $0xcc8] sm:$0xff] %v11
    %422 = vst [vmem:[#allocation3 + $0xcd0] sm:$0xff] %v11
    %423 = vst [vmem:[#allocation3 + $0xcd8] sm:$0xff] %v11
    %424 = vst [vmem:[#allocation3 + $0xce0] sm:$0xff] %v11
    %425 = vst [vmem:[#allocation3 + $0xce8] sm:$0xff] %v11
    %426 = vst [vmem:[#allocation3 + $0xcf0] sm:$0xff] %v11
    %427 = vst [vmem:[#allocation3 + $0xcf8] sm:$0xff] %v11
    %428 = vst [vmem:[#allocation3 + $0xd00] sm:$0xff] %v11
    %429 = vst [vmem:[#allocation3 + $0xd08] sm:$0xff] %v11
    %430 = vst [vmem:[#allocation3 + $0xd10] sm:$0xff] %v11
    %431 = vst [vmem:[#allocation3 + $0xd18] sm:$0xff] %v11
    %432 = vst [vmem:[#allocation3 + $0xd20] sm:$0xff] %v11
    %433 = vst [vmem:[#allocation3 + $0xd28] sm:$0xff] %v11
    %434 = vst [vmem:[#allocation3 + $0xd30] sm:$0xff] %v11
    %435 = vst [vmem:[#allocation3 + $0xd38] sm:$0xff] %v11
    %436 = vst [vmem:[#allocation3 + $0xd40] sm:$0xff] %v11
    %437 = vst [vmem:[#allocation3 + $0xd48] sm:$0xff] %v11
    %438 = vst [vmem:[#allocation3 + $0xd50] sm:$0xff] %v11
    %439 = vst [vmem:[#allocation3 + $0xd58] sm:$0xff] %v11
    %440 = vst [vmem:[#allocation3 + $0xd60] sm:$0xff] %v11
    %441 = vst [vmem:[#allocation3 + $0xd68] sm:$0xff] %v11
    %442 = vst [vmem:[#allocation3 + $0xd70] sm:$0xff] %v11
    %443 = vst [vmem:[#allocation3 + $0xd78] sm:$0xff] %v11
    %444 = vst [vmem:[#allocation3 + $0xd80] sm:$0xff] %v11
    %445 = vst [vmem:[#allocation3 + $0xd88] sm:$0xff] %v11
    %446 = vst [vmem:[#allocation3 + $0xd90] sm:$0xff] %v11
    %447 = vst [vmem:[#allocation3 + $0xd98] sm:$0xff] %v11
    %448 = vst [vmem:[#allocation3 + $0xda0] sm:$0xff] %v11
    %449 = vst [vmem:[#allocation3 + $0xda8] sm:$0xff] %v11
    %450 = vst [vmem:[#allocation3 + $0xdb0] sm:$0xff] %v11
    %451 = vst [vmem:[#allocation3 + $0xdb8] sm:$0xff] %v11
    %452 = vst [vmem:[#allocation3 + $0xdc0] sm:$0xff] %v11
    %453 = vst [vmem:[#allocation3 + $0xdc8] sm:$0xff] %v11
    %454 = vst [vmem:[#allocation3 + $0xdd0] sm:$0xff] %v11
    %455 = vst [vmem:[#allocation3 + $0xdd8] sm:$0xff] %v11
    %456 = vst [vmem:[#allocation3 + $0xde0] sm:$0xff] %v11
    %457 = vst [vmem:[#allocation3 + $0xde8] sm:$0xff] %v11
    %458 = vst [vmem:[#allocation3 + $0xdf0] sm:$0xff] %v11
    %459 = vst [vmem:[#allocation3 + $0xdf8] sm:$0xff] %v11
    %460 = vst [vmem:[#allocation3 + $0xe00] sm:$0xff] %v11
    %461 = vst [vmem:[#allocation3 + $0xe08] sm:$0xff] %v11
    %462 = vst [vmem:[#allocation3 + $0xe10] sm:$0xff] %v11
    %463 = vst [vmem:[#allocation3 + $0xe18] sm:$0xff] %v11
    %464 = vst [vmem:[#allocation3 + $0xe20] sm:$0xff] %v11
    %465 = vst [vmem:[#allocation3 + $0xe28] sm:$0xff] %v11
    %466 = vst [vmem:[#allocation3 + $0xe30] sm:$0xff] %v11
    %467 = vst [vmem:[#allocation3 + $0xe38] sm:$0xff] %v11
    %468 = vst [vmem:[#allocation3 + $0xe40] sm:$0xff] %v11
    %469 = vst [vmem:[#allocation3 + $0xe48] sm:$0xff] %v11
    %470 = vst [vmem:[#allocation3 + $0xe50] sm:$0xff] %v11
    %471 = vst [vmem:[#allocation3 + $0xe58] sm:$0xff] %v11
    %472 = vst [vmem:[#allocation3 + $0xe60] sm:$0xff] %v11
    %473 = vst [vmem:[#allocation3 + $0xe68] sm:$0xff] %v11
    %474 = vst [vmem:[#allocation3 + $0xe70] sm:$0xff] %v11
    %475 = vst [vmem:[#allocation3 + $0xe78] sm:$0xff] %v11
    %476 = vst [vmem:[#allocation3 + $0xe80] sm:$0xff] %v11
    %477 = vst [vmem:[#allocation3 + $0xe88] sm:$0xff] %v11
    %478 = vst [vmem:[#allocation3 + $0xe90] sm:$0xff] %v11
    %479 = vst [vmem:[#allocation3 + $0xe98] sm:$0xff] %v11
    %480 = vst [vmem:[#allocation3 + $0xea0] sm:$0xff] %v11
    %481 = vst [vmem:[#allocation3 + $0xea8] sm:$0xff] %v11
    %482 = vst [vmem:[#allocation3 + $0xeb0] sm:$0xff] %v11
    %483 = vst [vmem:[#allocation3 + $0xeb8] sm:$0xff] %v11
    %484 = vst [vmem:[#allocation3 + $0xec0] sm:$0xff] %v11
    %485 = vst [vmem:[#allocation3 + $0xec8] sm:$0xff] %v11
    %486 = vst [vmem:[#allocation3 + $0xed0] sm:$0xff] %v11
    %487 = vst [vmem:[#allocation3 + $0xed8] sm:$0xff] %v11
    %488 = vst [vmem:[#allocation3 + $0xee0] sm:$0xff] %v11
    %489 = vst [vmem:[#allocation3 + $0xee8] sm:$0xff] %v11
    %490 = vst [vmem:[#allocation3 + $0xef0] sm:$0xff] %v11
    %491 = vst [vmem:[#allocation3 + $0xef8] sm:$0xff] %v11
    %492 = vst [vmem:[#allocation3 + $0xf00] sm:$0xff] %v11
    %493 = vst [vmem:[#allocation3 + $0xf08] sm:$0xff] %v11
    %494 = vst [vmem:[#allocation3 + $0xf10] sm:$0xff] %v11
    %495 = vst [vmem:[#allocation3 + $0xf18] sm:$0xff] %v11
    %496 = vst [vmem:[#allocation3 + $0xf20] sm:$0xff] %v11
    %497 = vst [vmem:[#allocation3 + $0xf28] sm:$0xff] %v11
    %498 = vst [vmem:[#allocation3 + $0xf30] sm:$0xff] %v11
    %499 = vst [vmem:[#allocation3 + $0xf38] sm:$0xff] %v11
    %500 = vst [vmem:[#allocation3 + $0xf40] sm:$0xff] %v11
    %501 = vst [vmem:[#allocation3 + $0xf48] sm:$0xff] %v11
    %502 = vst [vmem:[#allocation3 + $0xf50] sm:$0xff] %v11
    %503 = vst [vmem:[#allocation3 + $0xf58] sm:$0xff] %v11
    %504 = vst [vmem:[#allocation3 + $0xf60] sm:$0xff] %v11
    %505 = vst [vmem:[#allocation3 + $0xf68] sm:$0xff] %v11
    %506 = vst [vmem:[#allocation3 + $0xf70] sm:$0xff] %v11
    %507 = vst [vmem:[#allocation3 + $0xf78] sm:$0xff] %v11
    %508 = vst [vmem:[#allocation3 + $0xf80] sm:$0xff] %v11
    %509 = vst [vmem:[#allocation3 + $0xf88] sm:$0xff] %v11
    %510 = vst [vmem:[#allocation3 + $0xf90] sm:$0xff] %v11
    %511 = vst [vmem:[#allocation3 + $0xf98] sm:$0xff] %v11
    %512 = vst [vmem:[#allocation3 + $0xfa0] sm:$0xff] %v11
    %513 = vst [vmem:[#allocation3 + $0xfa8] sm:$0xff] %v11
    %514 = vst [vmem:[#allocation3 + $0xfb0] sm:$0xff] %v11
    %515 = vst [vmem:[#allocation3 + $0xfb8] sm:$0xff] %v11
    %516 = vst [vmem:[#allocation3 + $0xfc0] sm:$0xff] %v11
    %517 = vst [vmem:[#allocation3 + $0xfc8] sm:$0xff] %v11
    %518 = vst [vmem:[#allocation3 + $0xfd0] sm:$0xff] %v11
    %519 = vst [vmem:[#allocation3 + $0xfd8] sm:$0xff] %v11
    %520 = vst [vmem:[#allocation3 + $0xfe0] sm:$0xff] %v11
    %521 = vst [vmem:[#allocation3 + $0xfe8] sm:$0xff] %v11
    %522 = vst [vmem:[#allocation3 + $0xff0] sm:$0xff] %v11
    %523 = vst [vmem:[#allocation3 + $0xff8] sm:$0xff] %v11
    // Predicated region
    $region6: #{tpu_custom_call.1} parent=1 // pred_check
      _
    $region7: #{tpu_custom_call.1} parent=1 // pred_check_branch
      %525 = sbr.rel (0) target = $region9
    $region8: #{tpu_custom_call.1} parent=1 // pred_region
      %s527 = ssub.s32 65536, 65536
      %528 = vsyncadd [#allocation4], %s527
      %s529 = sshll.u32 [#allocation3], 4
      %s530 = int_to_ptr.vmem [resolvable:$true] %s529
      %535 = dma.vmem_to_hbm [thread:$0]  %s530, 65536, %s1, [#allocation4], 4096, 4096, 256
    $region9: #{tpu_custom_call.1} parent=1 // pred_fallthru
      _
    // Predicated region
    $region10: #{tpu_custom_call.1} parent=1 // pred_check
      _
    $region11: #{tpu_custom_call.1} parent=1 // pred_check_branch
      %537 = sbr.rel (0) target = $region13
    $region12: #{tpu_custom_call.1} parent=1 // pred_region
      %538 = dma.done [#allocation4], 65536
    $region13: #{tpu_custom_call.1} parent=1 // pred_fallthru
      _
    %539 = vsyncpa [#allocation4], 1

</llo_original>
